<compile_context>
chip_gen: v7x
topology: tpu7x:2x2x1
jax: 0.10.0
libtpu: 0.0.40
codegen_flags: <defaults>
</compile_context>

<pallas_src>
import jax
import jax.numpy as jnp
from jax.experimental import pallas as pl
from jax.experimental.pallas import tpu as pltpu

LANE = 128  # TPU lane width; hidden widths are padded to this.


def _round_up(n, m):
    return ((n + m - 1) // m) * m


def _dqn_kernel(x_ref, w1_ref, w23_ref, w4_ref, b123_ref, b4_ref, o_ref):
    # Per grid step:
    #   x_ref   : (TILE_B, in_dim)   f32  — streamed batch tile (cast to bf16 here)
    #   w1_ref  : (in_dim, 128)      bf16 — layer-1 weight, out cols zero-padded
    #   w23_ref : (2, 128, 128)      bf16 — layers 2,3 weights, zero-padded
    #   w4_ref  : (128, out_dim)     bf16 — layer-4 weight (true output width)
    #   b123_ref: (3, 128)           f32  — biases 1..3, zero-padded
    #   b4_ref  : (1, out_dim)       f32
    #   o_ref   : (TILE_B, out_dim)  f32  — narrow output tile
    x = x_ref[...].astype(jnp.bfloat16)
    b = b123_ref[...]

    # Layer 1: Linear(inputs_size, 32) + ReLU   (computed at width 128)
    h = jnp.dot(x, w1_ref[...], preferred_element_type=jnp.float32)
    h = jnp.maximum(h + b[0:1, :], 0.0)

    # Layer 2: Linear(32, 64) + ReLU
    h = jnp.dot(h.astype(jnp.bfloat16), w23_ref[0],
                preferred_element_type=jnp.float32)
    h = jnp.maximum(h + b[1:2, :], 0.0)

    # Layer 3: Linear(64, 64) + ReLU
    h = jnp.dot(h.astype(jnp.bfloat16), w23_ref[1],
                preferred_element_type=jnp.float32)
    h = jnp.maximum(h + b[2:3, :], 0.0)

    # Layer 4: Linear(64, outputs_size) + ReLU (spec applies ReLU here too)
    h = jnp.dot(h.astype(jnp.bfloat16), w4_ref[...],
                preferred_element_type=jnp.float32)
    h = jnp.maximum(h + b4_ref[...], 0.0)

    o_ref[...] = h.astype(o_ref.dtype)


def pack_params(params):
    """Pack/pad parameters ONCE (call at init or after a param update).

    params = (w1, b1, w2, b2, w3, b3, w4, b4), weights stored [in, out]
    (transpose of nn.Linear's [out, in]).
    """
    w1, b1, w2, b2, w3, b3, w4, b4 = params
    in_dim = w1.shape[0]
    out_dim = w4.shape[1]
    assert w1.shape[1] == 32 and w2.shape == (32, 64) and w3.shape == (64, 64)
    assert w4.shape[0] == 64 and out_dim <= LANE, "outputs_size > 128 unsupported"

    bf16 = jnp.bfloat16
    w1p = jnp.zeros((in_dim, LANE), bf16).at[:, :32].set(w1.astype(bf16))
    w23 = jnp.zeros((2, LANE, LANE), bf16)
    w23 = w23.at[0, :32, :64].set(w2.astype(bf16))
    w23 = w23.at[1, :64, :64].set(w3.astype(bf16))
    w4p = jnp.zeros((LANE, out_dim), bf16).at[:64, :].set(w4.astype(bf16))
    b123 = jnp.zeros((3, LANE), jnp.float32)
    b123 = b123.at[0, :32].set(b1.reshape(-1).astype(jnp.float32))
    b123 = b123.at[1, :64].set(b2.reshape(-1).astype(jnp.float32))
    b123 = b123.at[2, :64].set(b3.reshape(-1).astype(jnp.float32))
    b4p = b4.reshape(1, out_dim).astype(jnp.float32)
    return (w1p, w23, w4p, b123, b4p)


def basic_dqn_forward(x, packed):
    """Fused BasicDQN forward.  x: [B, inputs_size] f32 -> [B, outputs_size] f32."""
    w1p, w23, w4p, b123, b4p = packed
    B, in_dim = x.shape
    assert in_dim == w1p.shape[0]
    out_dim = w4p.shape[1]

    # Batch tile: as large as practical (amortizes ~0.35 us/step pipeline cost),
    # but keep >=2 grid steps for moderately large B so v7x's two TensorCores
    # both get work under dimension_semantics=("parallel",).
    cap = 2048
    tile_b = _round_up(min(B, cap), 8)
    if B > 256:
        tile_b = min(tile_b, _round_up(pl.cdiv(B, 2), 8))
    grid = (pl.cdiv(B, tile_b),)  # ragged last block handled by Pallas masking

    return pl.pallas_call(
        _dqn_kernel,
        out_shape=jax.ShapeDtypeStruct((B, out_dim), jnp.float32),
        grid=grid,
        in_specs=[
            pl.BlockSpec((tile_b, in_dim), lambda i: (i, 0)),    # streamed x tile
            pl.BlockSpec((in_dim, LANE), lambda i: (0, 0)),      # resident weights
            pl.BlockSpec((2, LANE, LANE), lambda i: (0, 0, 0)),
            pl.BlockSpec((LANE, out_dim), lambda i: (0, 0)),
            pl.BlockSpec((3, LANE), lambda i: (0, 0)),           # resident biases
            pl.BlockSpec((1, out_dim), lambda i: (0, 0)),
        ],
        out_specs=pl.BlockSpec((tile_b, out_dim), lambda i: (i, 0)),
        compiler_params=pltpu.CompilerParams(
            dimension_semantics=("parallel",)),
    )(x, w1p, w23, w4p, b123, b4p)


def init_params(key, inputs_size, outputs_size):
    """PyTorch-style uniform(+/- 1/sqrt(fan_in)) init; weights stored [in, out]."""
    dims = [(inputs_size, 32), (32, 64), (64, 64), (64, outputs_size)]
    params = []
    for fan_in, fan_out in dims:
        key, kw, kb = jax.random.split(key, 3)
        bound = 1.0 / jnp.sqrt(jnp.float32(fan_in))
        w = jax.random.uniform(kw, (fan_in, fan_out), jnp.float32, -bound, bound)
        b = jax.random.uniform(kb, (1, fan_out), jnp.float32, -bound, bound)
        params.extend([w, b])
    return params


def reference_forward(x, params):
    """Pure-JAX reference using the same bf16-operand / f32-accumulate math."""
    w1, b1, w2, b2, w3, b3, w4, b4 = params

    def layer(h, w, bias):
        y = jnp.dot(h.astype(jnp.bfloat16), w.astype(jnp.bfloat16),
                    preferred_element_type=jnp.float32) + bias
        return jnp.maximum(y, 0.0)

    h = layer(x, w1, b1)
    h = layer(h, w2, b2)
    h = layer(h, w3, b3)
    h = layer(h, w4, b4)
    return h


if __name__ == "__main__":
    inputs_size = 16   # small state vector
    outputs_size = 4   # small action space

    key = jax.random.PRNGKey(0)
    params = init_params(key, inputs_size, outputs_size)
    packed = pack_params(params)   # pre-packed once, reused across calls

    # Small-batch check (single grid step, block == batch).
    key, kx = jax.random.split(key)
    x = jax.random.normal(kx, (8, inputs_size), jnp.float32)
    out = jax.block_until_ready(basic_dqn_forward(x, packed))
    ref = reference_forward(x, params)
    assert out.shape == (8, outputs_size)
    assert jnp.allclose(out, ref, atol=1e-2, rtol=1e-2), "mismatch vs reference (B=8)"

    # Multi-step grid + ragged last block (B=300 -> tile 152, grid 2).
    key, kx2 = jax.random.split(key)
    x2 = jax.random.normal(kx2, (300, inputs_size), jnp.float32)
    out2 = jax.block_until_ready(basic_dqn_forward(x2, packed))
    ref2 = reference_forward(x2, params)
    assert out2.shape == (300, outputs_size)
    assert jnp.allclose(out2, ref2, atol=1e-2, rtol=1e-2), "mismatch vs reference (B=300)"

    print("KERNEL_OK")
</pallas_src>

<mosaic_0001>
module attributes {stable_mosaic.version = 11 : i64} {
  func.func @_dqn_kernel(%arg0: i32, %arg1: memref<8x16xf32, #tpu.memory_space<vmem>>, %arg2: memref<16x128xbf16, #tpu.memory_space<vmem>>, %arg3: memref<2x128x128xbf16, #tpu.memory_space<vmem>>, %arg4: memref<128x4xbf16, #tpu.memory_space<vmem>>, %arg5: memref<3x128xf32, #tpu.memory_space<vmem>>, %arg6: memref<1x4xf32, #tpu.memory_space<vmem>>, %arg7: memref<8x4xf32, #tpu.memory_space<vmem>>) attributes {dimension_semantics = [#tpu.dimension_semantics<parallel>], iteration_bounds = array<i64: 1>, scalar_prefetch = 0 : i64, scratch_operands = 0 : i64, tpu.core_type = #tpu.core_type<tc>, window_params = [{transform_indices = @transform_0, window_bounds = array<i64: 8, 16>}, {pipeline_mode = #tpu.pipeline_mode<synchronous>, transform_indices = @transform_1, window_bounds = array<i64: 16, 128>}, {pipeline_mode = #tpu.pipeline_mode<synchronous>, transform_indices = @transform_2, window_bounds = array<i64: 2, 128, 128>}, {pipeline_mode = #tpu.pipeline_mode<synchronous>, transform_indices = @transform_3, window_bounds = array<i64: 128, 4>}, {pipeline_mode = #tpu.pipeline_mode<synchronous>, transform_indices = @transform_4, window_bounds = array<i64: 3, 128>}, {pipeline_mode = #tpu.pipeline_mode<synchronous>, transform_indices = @transform_5, window_bounds = array<i64: 1, 4>}, {transform_indices = @transform_6, window_bounds = array<i64: 8, 4>}]} {
    %c0 = arith.constant 0 : index
    %c0_0 = arith.constant 0 : index
    %0 = vector.load %arg1[%c0, %c0_0] : memref<8x16xf32, #tpu.memory_space<vmem>>, vector<8x16xf32>
    %1 = arith.truncf %0 : vector<8x16xf32> to vector<8x16xbf16>
    %c0_1 = arith.constant 0 : index
    %c0_2 = arith.constant 0 : index
    %2 = vector.load %arg5[%c0_1, %c0_2] : memref<3x128xf32, #tpu.memory_space<vmem>>, vector<3x128xf32>
    %c0_3 = arith.constant 0 : index
    %c0_4 = arith.constant 0 : index
    %3 = vector.load %arg2[%c0_3, %c0_4] : memref<16x128xbf16, #tpu.memory_space<vmem>>, vector<16x128xbf16>
    %cst = arith.constant dense<0.000000e+00> : vector<8x128xf32>
    %4 = tpu.matmul %1, %3, %cst {dimension_numbers = #tpu.dot_dimension_numbers<[1], [0], [0], [1], [0, 0, 1, 1], [], []>} : vector<8x16xbf16>, vector<16x128xbf16>, vector<8x128xf32> -> vector<8x128xf32>
    %5 = vector.extract_strided_slice %2 {offsets = [0, 0], sizes = [1, 128], strides = [1, 1]} : vector<3x128xf32> to vector<1x128xf32>
    %6 = vector.broadcast %5 : vector<1x128xf32> to vector<8x128xf32>
    %7 = arith.addf %4, %6 : vector<8x128xf32>
    %cst_5 = arith.constant 0.000000e+00 : f32
    %8 = vector.broadcast %cst_5 : f32 to vector<8x128xf32>
    %9 = arith.maximumf %7, %8 : vector<8x128xf32>
    %10 = arith.truncf %9 : vector<8x128xf32> to vector<8x128xbf16>
    %c0_6 = arith.constant 0 : index
    %c0_7 = arith.constant 0 : index
    %c0_8 = arith.constant 0 : index
    %11 = vector.load %arg3[%c0_6, %c0_7, %c0_8] : memref<2x128x128xbf16, #tpu.memory_space<vmem>>, vector<1x128x128xbf16>
    %12 = vector.shape_cast %11 : vector<1x128x128xbf16> to vector<128x128xbf16>
    %cst_9 = arith.constant dense<0.000000e+00> : vector<8x128xf32>
    %13 = tpu.matmul %10, %12, %cst_9 {dimension_numbers = #tpu.dot_dimension_numbers<[1], [0], [0], [1], [0, 0, 1, 1], [], []>} : vector<8x128xbf16>, vector<128x128xbf16>, vector<8x128xf32> -> vector<8x128xf32>
    %14 = vector.extract_strided_slice %2 {offsets = [1, 0], sizes = [1, 128], strides = [1, 1]} : vector<3x128xf32> to vector<1x128xf32>
    %15 = vector.broadcast %14 : vector<1x128xf32> to vector<8x128xf32>
    %16 = arith.addf %13, %15 : vector<8x128xf32>
    %cst_10 = arith.constant 0.000000e+00 : f32
    %17 = vector.broadcast %cst_10 : f32 to vector<8x128xf32>
    %18 = arith.maximumf %16, %17 : vector<8x128xf32>
    %19 = arith.truncf %18 : vector<8x128xf32> to vector<8x128xbf16>
    %c1 = arith.constant 1 : index
    %c0_11 = arith.constant 0 : index
    %c0_12 = arith.constant 0 : index
    %20 = vector.load %arg3[%c1, %c0_11, %c0_12] : memref<2x128x128xbf16, #tpu.memory_space<vmem>>, vector<1x128x128xbf16>
    %21 = vector.shape_cast %20 : vector<1x128x128xbf16> to vector<128x128xbf16>
    %cst_13 = arith.constant dense<0.000000e+00> : vector<8x128xf32>
    %22 = tpu.matmul %19, %21, %cst_13 {dimension_numbers = #tpu.dot_dimension_numbers<[1], [0], [0], [1], [0, 0, 1, 1], [], []>} : vector<8x128xbf16>, vector<128x128xbf16>, vector<8x128xf32> -> vector<8x128xf32>
    %23 = vector.extract_strided_slice %2 {offsets = [2, 0], sizes = [1, 128], strides = [1, 1]} : vector<3x128xf32> to vector<1x128xf32>
    %24 = vector.broadcast %23 : vector<1x128xf32> to vector<8x128xf32>
    %25 = arith.addf %22, %24 : vector<8x128xf32>
    %cst_14 = arith.constant 0.000000e+00 : f32
    %26 = vector.broadcast %cst_14 : f32 to vector<8x128xf32>
    %27 = arith.maximumf %25, %26 : vector<8x128xf32>
    %28 = arith.truncf %27 : vector<8x128xf32> to vector<8x128xbf16>
    %c0_15 = arith.constant 0 : index
    %c0_16 = arith.constant 0 : index
    %29 = vector.load %arg4[%c0_15, %c0_16] : memref<128x4xbf16, #tpu.memory_space<vmem>>, vector<128x4xbf16>
    %cst_17 = arith.constant dense<0.000000e+00> : vector<8x4xf32>
    %30 = tpu.matmul %28, %29, %cst_17 {dimension_numbers = #tpu.dot_dimension_numbers<[1], [0], [0], [1], [0, 0, 1, 1], [], []>} : vector<8x128xbf16>, vector<128x4xbf16>, vector<8x4xf32> -> vector<8x4xf32>
    %c0_18 = arith.constant 0 : index
    %c0_19 = arith.constant 0 : index
    %31 = vector.load %arg6[%c0_18, %c0_19] : memref<1x4xf32, #tpu.memory_space<vmem>>, vector<1x4xf32>
    %32 = vector.broadcast %31 : vector<1x4xf32> to vector<8x4xf32>
    %33 = arith.addf %30, %32 : vector<8x4xf32>
    %cst_20 = arith.constant 0.000000e+00 : f32
    %34 = vector.broadcast %cst_20 : f32 to vector<8x4xf32>
    %35 = arith.maximumf %33, %34 : vector<8x4xf32>
    %c0_21 = arith.constant 0 : index
    %c0_22 = arith.constant 0 : index
    %36 = vector.load %arg7[%c0_21, %c0_22] : memref<8x4xf32, #tpu.memory_space<vmem>>, vector<8x4xf32>
    tpu.vector_store %arg7[%c0_21, %c0_22], %35 {strides = array<i32>} : memref<8x4xf32, #tpu.memory_space<vmem>>, vector<8x4xf32>,
    return
  }
  func.func @transform_0(%arg0: i32) -> (i32, i32) {
    %c0_i32 = arith.constant 0 : i32
    %c0_i32_0 = arith.constant 0 : i32
    return %arg0, %c0_i32 : i32, i32
  }
  func.func @transform_1(%arg0: i32) -> (i32, i32) {
    %c0_i32 = arith.constant 0 : i32
    %c0_i32_0 = arith.constant 0 : i32
    %c0_i32_1 = arith.constant 0 : i32
    return %c0_i32, %c0_i32_0 : i32, i32
  }
  func.func @transform_2(%arg0: i32) -> (i32, i32, i32) {
    %c0_i32 = arith.constant 0 : i32
    %c0_i32_0 = arith.constant 0 : i32
    %c0_i32_1 = arith.constant 0 : i32
    %c0_i32_2 = arith.constant 0 : i32
    return %c0_i32, %c0_i32_0, %c0_i32_1 : i32, i32, i32
  }
  func.func @transform_3(%arg0: i32) -> (i32, i32) {
    %c0_i32 = arith.constant 0 : i32
    %c0_i32_0 = arith.constant 0 : i32
    %c0_i32_1 = arith.constant 0 : i32
    return %c0_i32, %c0_i32_0 : i32, i32
  }
  func.func @transform_4(%arg0: i32) -> (i32, i32) {
    %c0_i32 = arith.constant 0 : i32
    %c0_i32_0 = arith.constant 0 : i32
    %c0_i32_1 = arith.constant 0 : i32
    return %c0_i32, %c0_i32_0 : i32, i32
  }
  func.func @transform_5(%arg0: i32) -> (i32, i32) {
    %c0_i32 = arith.constant 0 : i32
    %c0_i32_0 = arith.constant 0 : i32
    %c0_i32_1 = arith.constant 0 : i32
    return %c0_i32, %c0_i32_0 : i32, i32
  }
  func.func @transform_6(%arg0: i32) -> (i32, i32) {
    %c0_i32 = arith.constant 0 : i32
    %c0_i32_0 = arith.constant 0 : i32
    return %arg0, %c0_i32 : i32, i32
  }
}

</mosaic_0001>

<llo_original>
// kernel: tpu_custom_call.1
$region0: #{tpu_custom_call.1}
  #allocation0 [shape = 'u32[]', space=smem, size = 0x4, offset = 0x4, fixed_abs, tag = 'smem constant byte address 0x4 - core index']
  #allocation1 [shape = 'u32[144,128]{1,0:T(1,128)}', space=vmem, size = 0x12000, scoped, tag = 'internal scratch']
  %s0 = inlined_call_operand.vmem [shape: f32[8,16], index: 0, kind: input, shape index: {}]
  %s1 = inlined_call_operand.vmem [shape: bf16[16,128], index: 1, kind: input, shape index: {}]
  %s2 = inlined_call_operand.hbm [shape: bf16[2,128,128], index: 2, kind: input, shape index: {}]
  %s3 = inlined_call_operand.vmem [shape: bf16[128,4], index: 3, kind: input, shape index: {}]
  %s4 = inlined_call_operand.vmem [shape: f32[3,128], index: 4, kind: input, shape index: {}]
  %s5 = inlined_call_operand.vmem [shape: f32[1,4], index: 5, kind: input, shape index: {}]
  %s6 = inlined_call_operand.vmem [shape: f32[8,4], index: 6, kind: output, shape index: {}]
  %s7 = sld [smem:[#allocation0]]
  $region38: #{tpu_custom_call.1} parent=0
    _
  %s9 = ssub.s32 1, %s7
  %s10 = scalar_select 0, %s9, %s7
  $region1: #{tpu_custom_call.1} parent=0
    #allocation2 [shape = 'u8[65536]{0}', space=vmem, size = 0x10000, scoped, tag = 'input window, operand 2, single buffered']
    #allocation3 [shape = 's32[1]{0}', space=sflag, size = 0x4, scoped, tag = 'scoped memory for tpu_custom_call.1']
    %11 = vsyncpa [#allocation3], 0
    // Predicated region
    $region2: #{tpu_custom_call.1} parent=1 // pred_check
      _
    $region3: #{tpu_custom_call.1} parent=1 // pred_check_branch
      %13 = sbr.rel (0) target = $region5
    $region4: #{tpu_custom_call.1} parent=1 // pred_region
      _
    $region5: #{tpu_custom_call.1} parent=1 // pred_fallthru
      _
    // Predicated region
    $region6: #{tpu_custom_call.1} parent=1 // pred_check
      _
    $region7: #{tpu_custom_call.1} parent=1 // pred_check_branch
      %15 = sbr.rel (0) target = $region9
    $region8: #{tpu_custom_call.1} parent=1 // pred_region
      _
    $region9: #{tpu_custom_call.1} parent=1 // pred_fallthru
      _
    // Predicated region
    $region10: #{tpu_custom_call.1} parent=1 // pred_check
      _
    $region11: #{tpu_custom_call.1} parent=1 // pred_check_branch
      %17 = sbr.rel (0) target = $region13
    $region12: #{tpu_custom_call.1} parent=1 // pred_region
      %s19 = ssub.s32 2048, 2048
      %20 = vsyncadd [#allocation3], %s19
      %s21 = sshll.u32 [#allocation2], 4
      %s22 = int_to_ptr.vmem [resolvable:$true] %s21
      %27 = dma.hbm_to_vmem [thread:$0]  %s2, 2048, %s22, [#allocation3], 64, 64, 4
    $region13: #{tpu_custom_call.1} parent=1 // pred_fallthru
      _
    // Predicated region
    $region14: #{tpu_custom_call.1} parent=1 // pred_check
      _
    $region15: #{tpu_custom_call.1} parent=1 // pred_check_branch
      %29 = sbr.rel (0) target = $region17
    $region16: #{tpu_custom_call.1} parent=1 // pred_region
      _
    $region17: #{tpu_custom_call.1} parent=1 // pred_fallthru
      _
    // Predicated region
    $region18: #{tpu_custom_call.1} parent=1 // pred_check
      _
    $region19: #{tpu_custom_call.1} parent=1 // pred_check_branch
      %31 = sbr.rel (0) target = $region21
    $region20: #{tpu_custom_call.1} parent=1 // pred_region
      _
    $region21: #{tpu_custom_call.1} parent=1 // pred_fallthru
      _
    // Predicated region
    $region22: #{tpu_custom_call.1} parent=1 // pred_check
      _
    $region23: #{tpu_custom_call.1} parent=1 // pred_check_branch
      %33 = sbr.rel (0) target = $region25
    $region24: #{tpu_custom_call.1} parent=1 // pred_region
      _
    $region25: #{tpu_custom_call.1} parent=1 // pred_fallthru
      _
    // Predicated region
    $region26: #{tpu_custom_call.1} parent=1 // pred_check
      _
    $region27: #{tpu_custom_call.1} parent=1 // pred_check_branch
      %35 = sbr.rel (0) target = $region29
    $region28: #{tpu_custom_call.1} parent=1 // pred_region
      %36 = dma.done [#allocation3], 2048
    $region29: #{tpu_custom_call.1} parent=1 // pred_fallthru
      _
    %v38 = vld [vmem:[%s0] sm:$0xff]
    %v39 = vpack.c.bf16 %v38, %v38
    %v40 = vld [vmem:[%s4] sm:$0x7]
    %v41 = vld [vmem:[%s1] sm:$0xf]
    %v42 = vld [vmem:[%s1 + $0x4] sm:$0xf]
    %v43 = vlaneseq
    %v44 = vshrl.u32 %v43, 7
    %v45 = vsub.s32 0, %v44
    %v46 = vrot.slane %v40, %v45
    %v49 = vunpack.c.l.b16 %v41
    %v50 = vunpack.c.l.b16 %v42
    %v51 = vpack.c.b16 %v50, %v49
    %vm53 = vcmask 130048
    %v55 = vsel %vm53, %v39, 0
    %57 = vmatprep.subr.bf16.mxu0 0
    %58 = vmatpush1.bf16.msra.mxu0 %v51
    %59 = vmatprep.subr.bf16.mxu0 0
    %60 = vmatpush1.bf16.msra.mxu0 0
    %61 = vmatprep.subr.bf16.mxu0 0
    %62 = vmatpush1.bf16.msra.mxu0 0
    %63 = vmatprep.subr.bf16.mxu0 0
    %64 = vmatpush1.bf16.msra.mxu0 0
    %65 = vmatprep.subr.bf16.mxu0 0
    %66 = vmatpush1.bf16.msra.mxu0 0
    %67 = vmatprep.subr.bf16.mxu0 0
    %68 = vmatpush1.bf16.msra.mxu0 0
    %69 = vmatprep.subr.bf16.mxu0 0
    %70 = vmatpush1.bf16.msra.mxu0 0
    %71 = vmatprep.subr.bf16.mxu0 0
    %72 = vmatpush1.bf16.msra.mxu0 0
    %73 = vmatprep.subr.bf16.mxu0 0
    %74 = vmatpush1.bf16.msra.mxu0 0
    %75 = vmatprep.subr.bf16.mxu0 0
    %76 = vmatpush1.bf16.msra.mxu0 0
    %77 = vmatprep.subr.bf16.mxu0 0
    %78 = vmatpush1.bf16.msra.mxu0 0
    %79 = vmatprep.subr.bf16.mxu0 0
    %80 = vmatpush1.bf16.msra.mxu0 0
    %81 = vmatprep.subr.bf16.mxu0 0
    %82 = vmatpush1.bf16.msra.mxu0 0
    %83 = vmatprep.subr.bf16.mxu0 0
    %84 = vmatpush1.bf16.msra.mxu0 0
    %85 = vmatprep.subr.bf16.mxu0 0
    %86 = vmatpush1.bf16.msra.mxu0 0
    %87 = vmatprep.subr.bf16.mxu0 0
    %88 = vmatpush1.bf16.msra.mxu0 0
    %89 = vmatprep.mubr.bf16.mxu0 0
    %90 = vmatmul.mubr.bf16.gmra.mrb[0].mxu0 %v55
    %v91 = vpop.f32.mrb[0].mxu0
    %v92 = vadd.f32 %v46, %v91
    %v93 = vpop.f32.mrb[0].mxu0
    %v94 = vpop.f32.mrb[0].mxu0
    %v95 = vpop.f32.mrb[0].mxu0
    %96 = vdwg.mxu0
    %v97 = vmax.f32 %v92, 0.0
    %v98 = vpack.c.bf16 %v97, %v97
    %v99 = vld [vmem:[#allocation2] sm:$0xf]
    %v100 = vld [vmem:[#allocation2 + $0x4] sm:$0xf]
    %v101 = vld [vmem:[#allocation2 + $0x8] sm:$0xf]
    %v102 = vld [vmem:[#allocation2 + $0xc] sm:$0xf]
    %v103 = vld [vmem:[#allocation2 + $0x10] sm:$0xf]
    %v104 = vld [vmem:[#allocation2 + $0x14] sm:$0xf]
    %v105 = vld [vmem:[#allocation2 + $0x18] sm:$0xf]
    %v106 = vld [vmem:[#allocation2 + $0x1c] sm:$0xf]
    %v107 = vld [vmem:[#allocation2 + $0x20] sm:$0xf]
    %v108 = vld [vmem:[#allocation2 + $0x24] sm:$0xf]
    %v109 = vld [vmem:[#allocation2 + $0x28] sm:$0xf]
    %v110 = vld [vmem:[#allocation2 + $0x2c] sm:$0xf]
    %v111 = vld [vmem:[#allocation2 + $0x30] sm:$0xf]
    %v112 = vld [vmem:[#allocation2 + $0x34] sm:$0xf]
    %v113 = vld [vmem:[#allocation2 + $0x38] sm:$0xf]
    %v114 = vld [vmem:[#allocation2 + $0x3c] sm:$0xf]
    %v115 = vlaneseq
    %v116 = vshrl.u32 %v115, 7
    %v117 = vsub.s32 1, %v116
    %v118 = vrot.slane %v40, %v117
    %v135 = vunpack.c.l.b16 %v99
    %v136 = vunpack.c.l.b16 %v100
    %v137 = vunpack.c.l.b16 %v101
    %v138 = vunpack.c.l.b16 %v102
    %v139 = vunpack.c.l.b16 %v103
    %v140 = vunpack.c.l.b16 %v104
    %v141 = vunpack.c.l.b16 %v105
    %v142 = vunpack.c.l.b16 %v106
    %v143 = vunpack.c.l.b16 %v107
    %v144 = vunpack.c.l.b16 %v108
    %v145 = vunpack.c.l.b16 %v109
    %v146 = vunpack.c.l.b16 %v110
    %v147 = vunpack.c.l.b16 %v111
    %v148 = vunpack.c.l.b16 %v112
    %v149 = vunpack.c.l.b16 %v113
    %v150 = vunpack.c.l.b16 %v114
    %v151 = vpack.c.b16 %v136, %v135
    %v152 = vpack.c.b16 %v138, %v137
    %v153 = vpack.c.b16 %v140, %v139
    %v154 = vpack.c.b16 %v142, %v141
    %v155 = vpack.c.b16 %v144, %v143
    %v156 = vpack.c.b16 %v146, %v145
    %v157 = vpack.c.b16 %v148, %v147
    %v158 = vpack.c.b16 %v150, %v149
    %167 = vmatprep.subr.bf16.mxu0 0
    %168 = vmatpush1.bf16.msra.mxu0 %v151
    %169 = vmatprep.subr.bf16.mxu0 0
    %170 = vmatpush1.bf16.msra.mxu0 %v152
    %171 = vmatprep.subr.bf16.mxu0 0
    %172 = vmatpush1.bf16.msra.mxu0 %v153
    %173 = vmatprep.subr.bf16.mxu0 0
    %174 = vmatpush1.bf16.msra.mxu0 %v154
    %175 = vmatprep.subr.bf16.mxu0 0
    %176 = vmatpush1.bf16.msra.mxu0 %v155
    %177 = vmatprep.subr.bf16.mxu0 0
    %178 = vmatpush1.bf16.msra.mxu0 %v156
    %179 = vmatprep.subr.bf16.mxu0 0
    %180 = vmatpush1.bf16.msra.mxu0 %v157
    %181 = vmatprep.subr.bf16.mxu0 0
    %182 = vmatpush1.bf16.msra.mxu0 %v158
    %183 = vmatprep.subr.bf16.mxu0 0
    %184 = vmatpush1.bf16.msra.mxu0 0
    %185 = vmatprep.subr.bf16.mxu0 0
    %186 = vmatpush1.bf16.msra.mxu0 0
    %187 = vmatprep.subr.bf16.mxu0 0
    %188 = vmatpush1.bf16.msra.mxu0 0
    %189 = vmatprep.subr.bf16.mxu0 0
    %190 = vmatpush1.bf16.msra.mxu0 0
    %191 = vmatprep.subr.bf16.mxu0 0
    %192 = vmatpush1.bf16.msra.mxu0 0
    %193 = vmatprep.subr.bf16.mxu0 0
    %194 = vmatpush1.bf16.msra.mxu0 0
    %195 = vmatprep.subr.bf16.mxu0 0
    %196 = vmatpush1.bf16.msra.mxu0 0
    %197 = vmatprep.subr.bf16.mxu0 0
    %198 = vmatpush1.bf16.msra.mxu0 0
    %199 = vmatprep.mubr.bf16.mxu0 0
    %200 = vmatmul.mubr.bf16.gmra.mrb[0].mxu0 %v98
    %v201 = vpop.f32.mrb[0].mxu0
    %v202 = vadd.f32 %v118, %v201
    %v203 = vpop.f32.mrb[0].mxu0
    %v204 = vpop.f32.mrb[0].mxu0
    %v205 = vpop.f32.mrb[0].mxu0
    %206 = vdwg.mxu0
    %v207 = vmax.f32 %v202, 0.0
    %v208 = vpack.c.bf16 %v207, %v207
    %s209 = scalar_lea.vmem [#allocation2], 64
    %v210 = vld [vmem:[%s209] sm:$0xf]
    %v211 = vld [vmem:[%s209 + $0x4] sm:$0xf]
    %v212 = vld [vmem:[%s209 + $0x8] sm:$0xf]
    %v213 = vld [vmem:[%s209 + $0xc] sm:$0xf]
    %v214 = vld [vmem:[%s209 + $0x10] sm:$0xf]
    %v215 = vld [vmem:[%s209 + $0x14] sm:$0xf]
    %v216 = vld [vmem:[%s209 + $0x18] sm:$0xf]
    %v217 = vld [vmem:[%s209 + $0x1c] sm:$0xf]
    %v218 = vld [vmem:[%s209 + $0x20] sm:$0xf]
    %v219 = vld [vmem:[%s209 + $0x24] sm:$0xf]
    %v220 = vld [vmem:[%s209 + $0x28] sm:$0xf]
    %v221 = vld [vmem:[%s209 + $0x2c] sm:$0xf]
    %v222 = vld [vmem:[%s209 + $0x30] sm:$0xf]
    %v223 = vld [vmem:[%s209 + $0x34] sm:$0xf]
    %v224 = vld [vmem:[%s209 + $0x38] sm:$0xf]
    %v225 = vld [vmem:[%s209 + $0x3c] sm:$0xf]
    %v226 = vlaneseq
    %v227 = vshrl.u32 %v226, 7
    %v228 = vsub.s32 2, %v227
    %v229 = vrot.slane %v40, %v228
    %v246 = vunpack.c.l.b16 %v210
    %v247 = vunpack.c.l.b16 %v211
    %v248 = vunpack.c.l.b16 %v212
    %v249 = vunpack.c.l.b16 %v213
    %v250 = vunpack.c.l.b16 %v214
    %v251 = vunpack.c.l.b16 %v215
    %v252 = vunpack.c.l.b16 %v216
    %v253 = vunpack.c.l.b16 %v217
    %v254 = vunpack.c.l.b16 %v218
    %v255 = vunpack.c.l.b16 %v219
    %v256 = vunpack.c.l.b16 %v220
    %v257 = vunpack.c.l.b16 %v221
    %v258 = vunpack.c.l.b16 %v222
    %v259 = vunpack.c.l.b16 %v223
    %v260 = vunpack.c.l.b16 %v224
    %v261 = vunpack.c.l.b16 %v225
    %v262 = vpack.c.b16 %v247, %v246
    %v263 = vpack.c.b16 %v249, %v248
    %v264 = vpack.c.b16 %v251, %v250
    %v265 = vpack.c.b16 %v253, %v252
    %v266 = vpack.c.b16 %v255, %v254
    %v267 = vpack.c.b16 %v257, %v256
    %v268 = vpack.c.b16 %v259, %v258
    %v269 = vpack.c.b16 %v261, %v260
    %278 = vmatprep.subr.bf16.mxu0 0
    %279 = vmatpush1.bf16.msra.mxu0 %v262
    %280 = vmatprep.subr.bf16.mxu0 0
    %281 = vmatpush1.bf16.msra.mxu0 %v263
    %282 = vmatprep.subr.bf16.mxu0 0
    %283 = vmatpush1.bf16.msra.mxu0 %v264
    %284 = vmatprep.subr.bf16.mxu0 0
    %285 = vmatpush1.bf16.msra.mxu0 %v265
    %286 = vmatprep.subr.bf16.mxu0 0
    %287 = vmatpush1.bf16.msra.mxu0 %v266
    %288 = vmatprep.subr.bf16.mxu0 0
    %289 = vmatpush1.bf16.msra.mxu0 %v267
    %290 = vmatprep.subr.bf16.mxu0 0
    %291 = vmatpush1.bf16.msra.mxu0 %v268
    %292 = vmatprep.subr.bf16.mxu0 0
    %293 = vmatpush1.bf16.msra.mxu0 %v269
    %294 = vmatprep.subr.bf16.mxu0 0
    %295 = vmatpush1.bf16.msra.mxu0 0
    %296 = vmatprep.subr.bf16.mxu0 0
    %297 = vmatpush1.bf16.msra.mxu0 0
    %298 = vmatprep.subr.bf16.mxu0 0
    %299 = vmatpush1.bf16.msra.mxu0 0
    %300 = vmatprep.subr.bf16.mxu0 0
    %301 = vmatpush1.bf16.msra.mxu0 0
    %302 = vmatprep.subr.bf16.mxu0 0
    %303 = vmatpush1.bf16.msra.mxu0 0
    %304 = vmatprep.subr.bf16.mxu0 0
    %305 = vmatpush1.bf16.msra.mxu0 0
    %306 = vmatprep.subr.bf16.mxu0 0
    %307 = vmatpush1.bf16.msra.mxu0 0
    %308 = vmatprep.subr.bf16.mxu0 0
    %309 = vmatpush1.bf16.msra.mxu0 0
    %310 = vmatprep.mubr.bf16.mxu0 0
    %311 = vmatmul.mubr.bf16.gmra.mrb[0].mxu0 %v208
    %v312 = vpop.f32.mrb[0].mxu0
    %v313 = vadd.f32 %v229, %v312
    %v314 = vpop.f32.mrb[0].mxu0
    %v315 = vpop.f32.mrb[0].mxu0
    %v316 = vpop.f32.mrb[0].mxu0
    %317 = vdwg.mxu0
    %v318 = vmax.f32 %v313, 0.0
    %v319 = vpack.c.bf16 %v318, %v318
    %v320 = vld [vmem:[%s3] sm:$0xf]
    %v321 = vld [vmem:[%s3 + $0x4] sm:$0xf]
    %v322 = vld [vmem:[%s3 + $0x8] sm:$0xf]
    %v323 = vld [vmem:[%s3 + $0xc] sm:$0xf]
    %v324 = vld [vmem:[%s3 + $0x10] sm:$0xf]
    %v325 = vld [vmem:[%s3 + $0x14] sm:$0xf]
    %v326 = vld [vmem:[%s3 + $0x18] sm:$0xf]
    %v327 = vld [vmem:[%s3 + $0x1c] sm:$0xf]
    %v328 = vld [vmem:[%s3 + $0x20] sm:$0xf]
    %v329 = vld [vmem:[%s3 + $0x24] sm:$0xf]
    %v330 = vld [vmem:[%s3 + $0x28] sm:$0xf]
    %v331 = vld [vmem:[%s3 + $0x2c] sm:$0xf]
    %v332 = vld [vmem:[%s3 + $0x30] sm:$0xf]
    %v333 = vld [vmem:[%s3 + $0x34] sm:$0xf]
    %v334 = vld [vmem:[%s3 + $0x38] sm:$0xf]
    %v335 = vld [vmem:[%s3 + $0x3c] sm:$0xf]
    %v336 = vld [vmem:[%s5] sm:$0x1]
    %v338 = vlaneseq
    %v339 = vshrl.u32 %v338, 7
    %v340 = vsub.s32 0, %v339
    %v341 = vrot.slane %v336, %v340
    %v359 = vunpack.c.l.b16 %v320
    %v360 = vunpack.c.l.b16 %v321
    %v361 = vunpack.c.l.b16 %v322
    %v362 = vunpack.c.l.b16 %v323
    %v363 = vunpack.c.l.b16 %v324
    %v364 = vunpack.c.l.b16 %v325
    %v365 = vunpack.c.l.b16 %v326
    %v366 = vunpack.c.l.b16 %v327
    %v367 = vunpack.c.l.b16 %v328
    %v368 = vunpack.c.l.b16 %v329
    %v369 = vunpack.c.l.b16 %v330
    %v370 = vunpack.c.l.b16 %v331
    %v371 = vunpack.c.l.b16 %v332
    %v372 = vunpack.c.l.b16 %v333
    %v373 = vunpack.c.l.b16 %v334
    %v374 = vunpack.c.l.b16 %v335
    %v375 = vpack.c.b16 %v360, %v359
    %v376 = vpack.c.b16 %v362, %v361
    %v377 = vpack.c.b16 %v364, %v363
    %v378 = vpack.c.b16 %v366, %v365
    %v379 = vpack.c.b16 %v368, %v367
    %v380 = vpack.c.b16 %v370, %v369
    %v381 = vpack.c.b16 %v372, %v371
    %v382 = vpack.c.b16 %v374, %v373
    %391 = vmatprep.subr.bf16.mxu0 0
    %392 = vmatpush1.bf16.msra.mxu0 %v375
    %393 = vmatprep.subr.bf16.mxu0 0
    %394 = vmatpush1.bf16.msra.mxu0 %v376
    %395 = vmatprep.subr.bf16.mxu0 0
    %396 = vmatpush1.bf16.msra.mxu0 %v377
    %397 = vmatprep.subr.bf16.mxu0 0
    %398 = vmatpush1.bf16.msra.mxu0 %v378
    %399 = vmatprep.subr.bf16.mxu0 0
    %400 = vmatpush1.bf16.msra.mxu0 %v379
    %401 = vmatprep.subr.bf16.mxu0 0
    %402 = vmatpush1.bf16.msra.mxu0 %v380
    %403 = vmatprep.subr.bf16.mxu0 0
    %404 = vmatpush1.bf16.msra.mxu0 %v381
    %405 = vmatprep.subr.bf16.mxu0 0
    %406 = vmatpush1.bf16.msra.mxu0 %v382
    %407 = vmatprep.subr.bf16.mxu0 0
    %408 = vmatpush1.bf16.msra.mxu0 0
    %409 = vmatprep.subr.bf16.mxu0 0
    %410 = vmatpush1.bf16.msra.mxu0 0
    %411 = vmatprep.subr.bf16.mxu0 0
    %412 = vmatpush1.bf16.msra.mxu0 0
    %413 = vmatprep.subr.bf16.mxu0 0
    %414 = vmatpush1.bf16.msra.mxu0 0
    %415 = vmatprep.subr.bf16.mxu0 0
    %416 = vmatpush1.bf16.msra.mxu0 0
    %417 = vmatprep.subr.bf16.mxu0 0
    %418 = vmatpush1.bf16.msra.mxu0 0
    %419 = vmatprep.subr.bf16.mxu0 0
    %420 = vmatpush1.bf16.msra.mxu0 0
    %421 = vmatprep.subr.bf16.mxu0 0
    %422 = vmatpush1.bf16.msra.mxu0 0
    %423 = vmatprep.mubr.bf16.mxu0 0
    %424 = vmatmul.mubr.bf16.gmra.mrb[0].mxu0 %v319
    %v425 = vpop.f32.mrb[0].mxu0
    %v426 = vadd.f32 %v341, %v425
    %v427 = vpop.f32.mrb[0].mxu0
    %v428 = vpop.f32.mrb[0].mxu0
    %v429 = vpop.f32.mrb[0].mxu0
    %430 = vdwg.mxu0
    %v431 = vmax.f32 %v426, 0.0
    %vm432 = vcmask 31744
    %433 = vst.msk [vmem:[%s6] sm:$0xff] %vm432, %v431
    // Predicated region
    $region30: #{tpu_custom_call.1} parent=1 // pred_check
      _
    $region31: #{tpu_custom_call.1} parent=1 // pred_check_branch
      %435 = sbr.rel (0) target = $region33
    $region32: #{tpu_custom_call.1} parent=1 // pred_region
      _
    $region33: #{tpu_custom_call.1} parent=1 // pred_fallthru
      _
    // Predicated region
    $region34: #{tpu_custom_call.1} parent=1 // pred_check
      _
    $region35: #{tpu_custom_call.1} parent=1 // pred_check_branch
      %437 = sbr.rel (0) target = $region37
    $region36: #{tpu_custom_call.1} parent=1 // pred_region
      _
    $region37: #{tpu_custom_call.1} parent=1 // pred_fallthru
      _
    %438 = vsyncpa [#allocation3], 1

</llo_original>
